<compile_context>
chip_gen: v7x
topology: tpu7x:2x2x1
jax: 0.10.0
libtpu: 0.0.40
codegen_flags: <defaults>
</compile_context>

<pallas_src>
from collections import OrderedDict
from functools import partial

import jax
import jax.numpy as jnp
from jax.experimental import pallas as pl
from jax.experimental.pallas import tpu as pltpu


# ---------------------------------------------------------------------------
# Tiling / VMEM budgeting
# ---------------------------------------------------------------------------
_X_TILE_BUDGET_BYTES = 4 * 1024 * 1024   # per x buffer (x2 for double buffering)


def _round_up(x, m):
    return ((x + m - 1) // m) * m


def _pick_batch_tile(batch):
    """Sublane-legal batch tile; keep >=2 batch grid steps when B allows
    so the "parallel" axis can be sharded across v7x's two TensorCores."""
    if batch % 8 != 0:
        return batch                       # full dim is always a legal block
    cap = batch // 2 if batch >= 16 else batch
    for cand in (64, 32, 16, 8):
        if cand <= cap and batch % cand == 0:
            return cand
    return batch


def _pick_spatial_tile(hw, bytes_per_spatial):
    """Pick the spatial (lane-direction) tile.

    bytes_per_spatial = tb * round_up(C, 8) * itemsize  (lane-padding aware).
    Returns (thw, hw_pad): hw_pad > 0 means the caller must zero-pad HW.
    """
    def best_multiple_of_128(extent):
        best = 128
        t = 128
        while t <= extent:
            if extent % t == 0 and t * bytes_per_spatial <= _X_TILE_BUDGET_BYTES:
                best = t
            t += 128
        return best

    if hw % 128 == 0:
        return best_multiple_of_128(hw), 0
    if hw < 128 or hw * bytes_per_spatial <= _X_TILE_BUDGET_BYTES:
        return hw, 0                       # full extent is a legal block shape
    # ragged AND too large for one tile: zero-pad (sum is unaffected)
    hw_p = _round_up(hw, 128)
    return best_multiple_of_128(hw_p), hw_p - hw


def _vmem_limit_bytes(tb, c, thw, hidp, itemsize, with_target):
    """Explicit scoped-VMEM request: double-buffered x stream + resident
    operands + accumulator, with headroom, capped below v7x physical VMEM."""
    c8 = _round_up(c, 8)
    tb8 = _round_up(tb, 8)
    est = (2 * tb * c8 * thw * itemsize          # x (double-buffered)
           + 2 * c8 * hidp * 4                   # weight (resident)
           + 2 * 8 * hidp * 4                    # bias
           + 2 * tb8 * hidp * 4                  # embedding output
           + (2 * tb8 * hidp * 4 if with_target else 0)
           + tb8 * _round_up(c, 128) * 4)        # pooled-sum accumulator
    # TODO(synk): for very large f32 weights on v5e, also consider bf16 weights.
    return int(min(max(int(1.25 * est), 32 * 2**20), 56 * 2**20))


# ---------------------------------------------------------------------------
# Kernels: fused spatial-sum pool + linear projection (+ optional fused MSE)
# ---------------------------------------------------------------------------
def _pool_step(x_ref, acc_ref):
    """Accumulate the spatial sum of the current NCHW tile.

    x_ref: [tb, C, thw]  (channels on sublanes, spatial on lanes).
    Lane-direction reduce runs on the XLU and hides under the next tile's DMA;
    accumulation is f32 regardless of the streaming dtype.
    """
    @pl.when(pl.program_id(1) == 0)
    def _init():
        acc_ref[...] = jnp.zeros_like(acc_ref)

    acc_ref[...] += jnp.sum(x_ref[...].astype(jnp.float32), axis=-1)


def _embed_kernel(x_ref, w_ref, b_ref, o_ref, acc_ref):
    _pool_step(x_ref, acc_ref)

    @pl.when(pl.program_id(1) == pl.num_programs(1) - 1)
    def _finalize():
        # w is pre-scaled by 1/(H*W) -> this is the mean-pooled projection.
        emb = jnp.dot(acc_ref[...], w_ref[...],
                      preferred_element_type=jnp.float32) + b_ref[...]
        o_ref[...] = emb.astype(o_ref.dtype)


def _embed_mse_kernel(x_ref, w_ref, b_ref, t_ref, o_ref, loss_ref, acc_ref):
    _pool_step(x_ref, acc_ref)

    @pl.when(pl.program_id(1) == pl.num_programs(1) - 1)
    def _finalize():
        emb = jnp.dot(acc_ref[...], w_ref[...],
                      preferred_element_type=jnp.float32) + b_ref[...]
        o_ref[...] = emb.astype(o_ref.dtype)
        d = emb - t_ref[...]                 # padded HID cols give d == 0
        loss_ref[0, 0] = jnp.sum(d * d)      # per-batch-tile partial SSE


# ---------------------------------------------------------------------------
# Wrapper: layout plumbing + grid / BlockSpec construction
# ---------------------------------------------------------------------------
def _embedder_pallas_call(x_nchw, w, b, target=None, stream_dtype=jnp.float32,
                          x_tile_budget=None):
    """Fused mean-pool + projection (+ optional fused MSE partials).

    x_nchw : [B, C, H, W],  w : [C, HID] f32,  b : [HID] f32
    target : [B, HID] f32 or None
    Returns emb [B, HID] f32 (and per-batch-tile SSE partials when target given).
    """
    global _X_TILE_BUDGET_BYTES
    saved_budget = _X_TILE_BUDGET_BYTES
    if x_tile_budget is not None:            # test hook to force multi-tile grids
        _X_TILE_BUDGET_BYTES = x_tile_budget
    try:
        B, C, H, W = x_nchw.shape
        HID = w.shape[1]
        HW = H * W
        HIDp = _round_up(HID, 128)

        # Consume NCHW directly: [B, C, HW] is a free, metadata-only reshape.
        x = x_nchw.reshape(B, C, HW)
        if x.dtype != stream_dtype:
            x = x.astype(stream_dtype)       # bf16 streaming halves HBM read bytes

        # Fold 1/(H*W) into the (small) weight at trace time; pad HID to a
        # lane-dense multiple of 128 so the output store is unmasked.
        w_scaled = w.astype(jnp.float32) * (1.0 / HW)
        pad_hid = HIDp - HID
        if pad_hid:
            w_scaled = jnp.pad(w_scaled, ((0, 0), (0, pad_hid)))
            b_p = jnp.pad(b.astype(jnp.float32), (0, pad_hid)).reshape(1, HIDp)
        else:
            b_p = b.astype(jnp.float32).reshape(1, HIDp)

        itemsize = jnp.dtype(stream_dtype).itemsize
        tb = _pick_batch_tile(B)
        thw, hw_pad = _pick_spatial_tile(HW, tb * _round_up(C, 8) * itemsize)
        if hw_pad:
            x = jnp.pad(x, ((0, 0), (0, 0), (0, hw_pad)))   # zeros keep the sum exact
        HW_p = HW + hw_pad
        nb, ns = B // tb, HW_p // thw

        # TODO(synk): when ns is large, sweep pipeline_mode=pl.Buffered(3) on x_spec.
        x_spec = pl.BlockSpec((tb, C, thw), lambda bi, si: (bi, 0, si))
        in_specs = [
            x_spec,
            pl.BlockSpec((C, HIDp), lambda bi, si: (0, 0)),   # weight (resident)
            pl.BlockSpec((1, HIDp), lambda bi, si: (0, 0)),   # bias (resident)
        ]
        emb_spec = pl.BlockSpec((tb, HIDp), lambda bi, si: (bi, 0))
        emb_shape = jax.ShapeDtypeStruct((B, HIDp), jnp.float32)
        scratch = [pltpu.VMEM((tb, C), jnp.float32)]          # pooled-sum accumulator
        compiler_params = pltpu.CompilerParams(
            dimension_semantics=("parallel", "arbitrary"),
            vmem_limit_bytes=_vmem_limit_bytes(tb, C, thw, HIDp, itemsize,
                                               with_target=target is not None))

        if target is None:
            emb = pl.pallas_call(
                _embed_kernel,
                out_shape=emb_shape,
                grid_spec=pltpu.PrefetchScalarGridSpec(
                    num_scalar_prefetch=0, grid=(nb, ns),
                    in_specs=in_specs, out_specs=emb_spec,
                    scratch_shapes=scratch),
                compiler_params=compiler_params,
            )(x, w_scaled, b_p)
            return emb[:, :HID] if pad_hid else emb

        t_p = target.astype(jnp.float32)
        if pad_hid:
            t_p = jnp.pad(t_p, ((0, 0), (0, pad_hid)))        # padded cols -> zero diff
        in_specs = in_specs + [pl.BlockSpec((tb, HIDp), lambda bi, si: (bi, 0))]
        emb, loss_parts = pl.pallas_call(
            _embed_mse_kernel,
            out_shape=(emb_shape, jax.ShapeDtypeStruct((nb, 1), jnp.float32)),
            grid_spec=pltpu.PrefetchScalarGridSpec(
                num_scalar_prefetch=0, grid=(nb, ns),
                in_specs=in_specs,
                out_specs=(emb_spec,
                           pl.BlockSpec((1, 1), lambda bi, si: (bi, 0),
                                        memory_space=pltpu.MemorySpace.SMEM)),
                scratch_shapes=scratch),
            compiler_params=compiler_params,
        )(x, w_scaled, b_p, t_p)
        emb = emb[:, :HID] if pad_hid else emb
        return emb, loss_parts
    finally:
        _X_TILE_BUDGET_BYTES = saved_budget


# Jitted front-ends: weight scaling / padding / reshape fold into one program.
@partial(jax.jit, static_argnames=("stream_dtype",))
def _extract_feat_jit(x, w, b, stream_dtype=jnp.float32):
    return _embedder_pallas_call(x, w, b, None, stream_dtype)


@partial(jax.jit, static_argnames=("stream_dtype",))
def _forward_train_jit(x, w, b, target, stream_dtype=jnp.float32):
    emb, loss_parts = _embedder_pallas_call(x, w, b, target, stream_dtype)
    bsz, hid = target.shape
    loss = jnp.sum(loss_parts) / (bsz * hid)   # divide by the true element count
    return emb, loss


# ---------------------------------------------------------------------------
# Concrete embedder mirroring the BaseEmbedder control flow (JAX glue).
# ---------------------------------------------------------------------------
class PallasEmbedder:
    def __init__(self, in_channels, hidden, key, stream_dtype=jnp.float32):
        k1, k2 = jax.random.split(key)
        # deterministic synthetic parameters (no checkpoint load)
        self.w = (jax.random.normal(k1, (in_channels, hidden), jnp.float32)
                  * (1.0 / jnp.sqrt(in_channels)))
        self.b = 0.01 * jax.random.normal(k2, (hidden,), jnp.float32)
        self.stream_dtype = stream_dtype
        self.neck = None
        self.cls_head = None

    @property
    def with_neck(self):
        return self.neck is not None

    @property
    def with_cls_head(self):
        return self.cls_head is not None

    def init_weights(self, pretrained=None):
        # TODO(synk): pretrained checkpoint loading / print_log has no Pallas analogue.
        pass

    # --- abstract methods made concrete --------------------------------
    def extract_feat(self, data):
        return _extract_feat_jit(data, self.w, self.b,
                                 stream_dtype=self.stream_dtype)

    def extract_feats(self, datas):
        assert isinstance(datas, list)
        for data_item in datas:
            yield self.extract_feat(data_item)

    def forward_train(self, datas, target=None, **kwargs):
        B = datas.shape[0]
        HID = self.w.shape[1]
        if target is None:
            target = jnp.zeros((B, HID), jnp.float32)
        # fused kernel: embedding + per-batch-tile SSE partials in one pass
        _, loss = _forward_train_jit(datas, self.w, self.b, target,
                                     stream_dtype=self.stream_dtype)
        return dict(loss_embed=loss)

    def simple_test(self, img, **kwargs):
        return self.extract_feat(img)

    def forward_test(self, datas, **kwargs):
        if isinstance(datas, jnp.ndarray):
            datas = [datas]
        if len(datas) == 1:
            return self.simple_test(datas[0], **kwargs)
        raise NotImplementedError('Test has not been implemented')

    def forward(self, datas, return_loss=True, **kwargs):
        if return_loss:
            return self.forward_train(datas, **kwargs)
        return self.forward_test(datas, **kwargs)

    def _parse_losses(self, losses):
        # TODO(synk): torch.distributed all_reduce of log vars has no
        # single-process Pallas equivalent; skipped.
        log_vars = OrderedDict()
        for loss_name, loss_value in losses.items():
            if isinstance(loss_value, jnp.ndarray):
                log_vars[loss_name] = jnp.mean(loss_value)
            elif isinstance(loss_value, list):
                log_vars[loss_name] = sum(jnp.mean(v) for v in loss_value)
            else:
                raise TypeError(f'{loss_name} is not a tensor or list of tensors')
        loss = sum(v for k, v in log_vars.items() if 'loss' in k)
        log_vars['loss'] = loss
        log_vars = OrderedDict((k, float(v)) for k, v in log_vars.items())
        return loss, log_vars

    def train_step(self, datas, optimizer=None):
        losses = self.forward(**datas)
        loss, log_vars = self._parse_losses(losses)
        return dict(loss=loss, log_vars=log_vars,
                    num_samples=datas['datas'].shape[0])

    def val_step(self, datas, optimizer=None):
        return self.train_step(datas, optimizer)


# ---------------------------------------------------------------------------
if __name__ == "__main__":
    key = jax.random.PRNGKey(0)
    k_x, k_t, k_p = jax.random.split(key, 3)

    B, C, H, W, HID = 2, 4, 16, 16, 32
    x = jax.random.normal(k_x, (B, C, H, W), jnp.float32)     # NCHW input
    target = jax.random.normal(k_t, (B, HID), jnp.float32)

    model = PallasEmbedder(in_channels=C, hidden=HID, key=k_p)

    # test path (return_loss=False): embedding via the tiled Pallas kernel
    emb = model.forward([x], return_loss=False)
    emb = jax.block_until_ready(emb)

    # train path (return_loss=True): fused embedding + MSE kernel
    losses = model.forward(x, return_loss=True, target=target)
    loss, log_vars = model._parse_losses(losses)
    loss = jax.block_until_ready(loss)

    # reference check in plain JAX (f32 streaming path: tight tolerance)
    pooled_ref = jnp.mean(x.reshape(B, C, H * W), axis=-1)
    emb_ref = pooled_ref @ model.w + model.b
    loss_ref = jnp.mean((emb_ref - target) ** 2)
    assert jnp.allclose(emb, emb_ref, atol=1e-5, rtol=1e-5)
    assert jnp.allclose(loss, loss_ref, atol=1e-5, rtol=1e-5)

    # bf16-streaming variant (halves HBM read bytes; accumulation stays f32)
    emb_bf16 = jax.block_until_ready(
        _extract_feat_jit(x, model.w, model.b, stream_dtype=jnp.bfloat16))
    assert jnp.allclose(emb_bf16, emb_ref, atol=2e-2, rtol=2e-2)

    # multi-tile grid check (nb>1, ns>1): shrink the x-tile budget so the
    # spatial reduction really runs across several accumulator steps.
    B2, C2, H2, W2 = 16, 8, 32, 32
    x2 = jax.random.normal(jax.random.PRNGKey(1), (B2, C2, H2, W2), jnp.float32)
    w2 = 0.1 * jax.random.normal(jax.random.PRNGKey(2), (C2, HID), jnp.float32)
    b2 = 0.01 * jax.random.normal(jax.random.PRNGKey(3), (HID,), jnp.float32)
    t2 = jax.random.normal(jax.random.PRNGKey(4), (B2, HID), jnp.float32)
    emb2, loss_parts2 = _embedder_pallas_call(x2, w2, b2, t2,
                                              x_tile_budget=64 * 1024)
    emb2 = jax.block_until_ready(emb2)
    pooled2 = jnp.mean(x2.reshape(B2, C2, H2 * W2), axis=-1)
    emb2_ref = pooled2 @ w2 + b2
    loss2 = jnp.sum(loss_parts2) / (B2 * HID)
    loss2_ref = jnp.mean((emb2_ref - t2) ** 2)
    assert jnp.allclose(emb2, emb2_ref, atol=1e-4, rtol=1e-4)
    assert jnp.allclose(loss2, loss2_ref, atol=1e-4, rtol=1e-4)

    # ragged spatial extent (H*W not a multiple of 128) uses the full-extent block
    B3, C3, H3, W3 = 2, 4, 7, 7
    x3 = jax.random.normal(jax.random.PRNGKey(5), (B3, C3, H3, W3), jnp.float32)
    emb3 = jax.block_until_ready(_embedder_pallas_call(x3, model.w, model.b))
    emb3_ref = jnp.mean(x3.reshape(B3, C3, H3 * W3), axis=-1) @ model.w + model.b
    assert jnp.allclose(emb3, emb3_ref, atol=1e-5, rtol=1e-5)

    print("KERNEL_OK")
</pallas_src>

<mosaic_0001>
module attributes {stable_mosaic.version = 11 : i64} {
  func.func @_embed_kernel(%arg0: i32, %arg1: i32, %arg2: memref<2x4x256xf32, #tpu.memory_space<vmem>>, %arg3: memref<4x128xf32, #tpu.memory_space<vmem>>, %arg4: memref<1x128xf32, #tpu.memory_space<vmem>>, %arg5: memref<2x128xf32, #tpu.memory_space<vmem>>, %arg6: memref<2x4xf32, #tpu.memory_space<vmem>>) attributes {dimension_semantics = [#tpu.dimension_semantics<parallel>, #tpu.dimension_semantics<arbitrary>], iteration_bounds = array<i64: 1, 1>, scalar_prefetch = 0 : i64, scratch_operands = 1 : i64, tpu.core_type = #tpu.core_type<tc>, window_params = [{transform_indices = @transform_0, window_bounds = array<i64: 2, 4, 256>}, {pipeline_mode = #tpu.pipeline_mode<synchronous>, transform_indices = @transform_1, window_bounds = array<i64: 4, 128>}, {pipeline_mode = #tpu.pipeline_mode<synchronous>, transform_indices = @transform_2, window_bounds = array<i64: 1, 128>}, {transform_indices = @transform_3, window_bounds = array<i64: 2, 128>}]} {
    %c0_i32 = arith.constant 0 : i32
    %0 = arith.cmpi eq, %arg1, %c0_i32 : i32
    %1 = arith.extui %0 : i1 to i32
    %c0_i32_0 = arith.constant 0 : i32
    %2 = arith.cmpi ne, %1, %c0_i32_0 : i32
    scf.if %2 {
      %cst_9 = arith.constant 0.000000e+00 : f32
      %11 = vector.broadcast %cst_9 : f32 to vector<2x4xf32>
      %c0_10 = arith.constant 0 : index
      %c0_11 = arith.constant 0 : index
      %12 = vector.load %arg6[%c0_10, %c0_11] : memref<2x4xf32, #tpu.memory_space<vmem>>, vector<2x4xf32>
      tpu.vector_store %arg6[%c0_10, %c0_11], %11 {strides = array<i32>} : memref<2x4xf32, #tpu.memory_space<vmem>>, vector<2x4xf32>,
    } else {
    }
    %c0 = arith.constant 0 : index
    %c0_1 = arith.constant 0 : index
    %3 = vector.load %arg6[%c0, %c0_1] : memref<2x4xf32, #tpu.memory_space<vmem>>, vector<2x4xf32>
    %c0_2 = arith.constant 0 : index
    %c0_3 = arith.constant 0 : index
    %c0_4 = arith.constant 0 : index
    %4 = vector.load %arg2[%c0_2, %c0_3, %c0_4] : memref<2x4x256xf32, #tpu.memory_space<vmem>>, vector<2x4x256xf32>
    %cst = arith.constant dense<0.000000e+00> : vector<2x4xf32>
    %5 = vector.multi_reduction <add>, %4, %cst [2] : vector<2x4x256xf32> to vector<2x4xf32>
    %6 = arith.addf %3, %5 : vector<2x4xf32>
    %c0_5 = arith.constant 0 : index
    %c0_6 = arith.constant 0 : index
    %7 = vector.load %arg6[%c0_5, %c0_6] : memref<2x4xf32, #tpu.memory_space<vmem>>, vector<2x4xf32>
    tpu.vector_store %arg6[%c0_5, %c0_6], %6 {strides = array<i32>} : memref<2x4xf32, #tpu.memory_space<vmem>>, vector<2x4xf32>,
    %c0_i32_7 = arith.constant 0 : i32
    %8 = arith.cmpi eq, %arg1, %c0_i32_7 : i32
    %9 = arith.extui %8 : i1 to i32
    %c0_i32_8 = arith.constant 0 : i32
    %10 = arith.cmpi ne, %9, %c0_i32_8 : i32
    scf.if %10 {
      %c0_9 = arith.constant 0 : index
      %c0_10 = arith.constant 0 : index
      %11 = vector.load %arg6[%c0_9, %c0_10] : memref<2x4xf32, #tpu.memory_space<vmem>>, vector<2x4xf32>
      %c0_11 = arith.constant 0 : index
      %c0_12 = arith.constant 0 : index
      %12 = vector.load %arg3[%c0_11, %c0_12] : memref<4x128xf32, #tpu.memory_space<vmem>>, vector<4x128xf32>
      %cst_13 = arith.constant dense<0.000000e+00> : vector<2x128xf32>
      %13 = tpu.matmul %11, %12, %cst_13 {dimension_numbers = #tpu.dot_dimension_numbers<[1], [0], [0], [1], [0, 0, 1, 1], [], []>} : vector<2x4xf32>, vector<4x128xf32>, vector<2x128xf32> -> vector<2x128xf32>
      %c0_14 = arith.constant 0 : index
      %c0_15 = arith.constant 0 : index
      %14 = vector.load %arg4[%c0_14, %c0_15] : memref<1x128xf32, #tpu.memory_space<vmem>>, vector<1x128xf32>
      %15 = vector.broadcast %14 : vector<1x128xf32> to vector<2x128xf32>
      %16 = arith.addf %13, %15 : vector<2x128xf32>
      %c0_16 = arith.constant 0 : index
      %c0_17 = arith.constant 0 : index
      %17 = vector.load %arg5[%c0_16, %c0_17] : memref<2x128xf32, #tpu.memory_space<vmem>>, vector<2x128xf32>
      tpu.vector_store %arg5[%c0_16, %c0_17], %16 {strides = array<i32>} : memref<2x128xf32, #tpu.memory_space<vmem>>, vector<2x128xf32>,
    } else {
    }
    return
  }
  func.func @transform_0(%arg0: i32, %arg1: i32) -> (i32, i32, i32) {
    %c0_i32 = arith.constant 0 : i32
    %c0_i32_0 = arith.constant 0 : i32
    return %arg0, %c0_i32, %arg1 : i32, i32, i32
  }
  func.func @transform_1(%arg0: i32, %arg1: i32) -> (i32, i32) {
    %c0_i32 = arith.constant 0 : i32
    %c0_i32_0 = arith.constant 0 : i32
    %c0_i32_1 = arith.constant 0 : i32
    return %c0_i32, %c0_i32_0 : i32, i32
  }
  func.func @transform_2(%arg0: i32, %arg1: i32) -> (i32, i32) {
    %c0_i32 = arith.constant 0 : i32
    %c0_i32_0 = arith.constant 0 : i32
    %c0_i32_1 = arith.constant 0 : i32
    return %c0_i32, %c0_i32_0 : i32, i32
  }
  func.func @transform_3(%arg0: i32, %arg1: i32) -> (i32, i32) {
    %c0_i32 = arith.constant 0 : i32
    %c0_i32_0 = arith.constant 0 : i32
    return %arg0, %c0_i32 : i32, i32
  }
}

</mosaic_0001>

<llo_original>
// kernel: _extract_feat_jit.1
$region0: #{_extract_feat_jit.1}
  #allocation0 [shape = 'u32[]', space=smem, size = 0x4, offset = 0x4, fixed_abs, tag = 'smem constant byte address 0x4 - core index']
  #allocation1 [shape = 'u32[144,128]{1,0:T(1,128)}', space=vmem, size = 0x12000, scoped, tag = 'internal scratch']
  #allocation2 [shape = 'f32[2,4]{1,0:T(2,128)}', space=vmem, size = 0x400, scoped, tag = 'scratch operand']
  %s0 = inlined_call_operand.vmem [shape: f32[2,4,256], index: 0, kind: input, shape index: {}]
  %s1 = inlined_call_operand.vmem [shape: f32[4,128], index: 1, kind: input, shape index: {}]
  %s2 = inlined_call_operand.vmem [shape: f32[1,128], index: 2, kind: input, shape index: {}]
  %s3 = inlined_call_operand.hbm [shape: f32[2,128], index: 3, kind: output, shape index: {}]
  %s4 = sld [smem:[#allocation0]]
  $region30: #{_extract_feat_jit.1} parent=0
    _
  %s6 = ssub.s32 1, %s4
  %s7 = scalar_select 0, %s6, %s4
  $region1: #{_extract_feat_jit.1} parent=0
    #allocation3 [shape = 'u8[1024]{0}', space=vmem, size = 0x400, scoped, tag = 'output window, operand 0, single buffered']
    #allocation4 [shape = 's32[1]{0}', space=sflag, size = 0x4, scoped, tag = 'scoped memory for _extract_feat_jit.1']
    %8 = vsyncpa [#allocation4], 0
    // Predicated region
    $region2: #{_extract_feat_jit.1} parent=1 // pred_check
      _
    $region3: #{_extract_feat_jit.1} parent=1 // pred_check_branch
      %10 = sbr.rel (0) target = $region5
    $region4: #{_extract_feat_jit.1} parent=1 // pred_region
      _
    $region5: #{_extract_feat_jit.1} parent=1 // pred_fallthru
      _
    // Predicated region
    $region6: #{_extract_feat_jit.1} parent=1 // pred_check
      _
    $region7: #{_extract_feat_jit.1} parent=1 // pred_check_branch
      %12 = sbr.rel (0) target = $region9
    $region8: #{_extract_feat_jit.1} parent=1 // pred_region
      _
    $region9: #{_extract_feat_jit.1} parent=1 // pred_fallthru
      _
    // Predicated region
    $region10: #{_extract_feat_jit.1} parent=1 // pred_check
      _
    $region11: #{_extract_feat_jit.1} parent=1 // pred_check_branch
      %14 = sbr.rel (0) target = $region13
    $region12: #{_extract_feat_jit.1} parent=1 // pred_region
      _
    $region13: #{_extract_feat_jit.1} parent=1 // pred_fallthru
      _
    %p15 = scmp.eq.s32.totalorder 0, 0
    // Predicated region
    $region14: #{_extract_feat_jit.1} parent=1 // pred_check
      %p16 = pneg %p15
    $region15: #{_extract_feat_jit.1} parent=1 // pred_check_branch
      %18 = sbr.rel (%p16) target = $region17
    $region16: #{_extract_feat_jit.1} parent=1 // pred_region
      %vm19 = vcmask 25600
      %20 = vst.msk [vmem:[#allocation2] sm:$0x3] %vm19, 0.0
    $region17: #{_extract_feat_jit.1} parent=1 // pred_fallthru
      _
    %v21 = vld [vmem:[#allocation2] sm:$0x3]
    %v22 = vld [vmem:[%s0] sm:$0xff]
    %v23 = vld [vmem:[%s0 + $0x8] sm:$0xff]
    %v26 = vcombine.high %v22, %v22
    %v27 = vcombine.high %v23, %v23
    %vm30 = vcmask 1043456
    %v31 = vsel %vm30, %v22, 0.0
    %v32 = vsel %vm30, %v26, 0.0
    %v33 = vadd.f32 %v31, %v32
    %34 = vadd.xlane.f32.xlu0 %v33
    %v35 = vpop.xlane.xlu0 %34
    %v36 = vsel %vm30, %v23, 0.0
    %v37 = vsel %vm30, %v27, 0.0
    %v38 = vadd.f32 %v36, %v37
    %39 = vadd.xlane.f32.xlu0 %v38
    %v40 = vpop.xlane.xlu0 %39
    %v43 = vlaneseq
    %v44 = vand.u32 %v43, 127
    %v45 = vlaneseq
    %v46 = vshrl.u32 %v45, 7
    %v47 = vsub.s32 %v44, %v46
    %v48 = vrot.slane %v35, %v47
    %v49 = vlaneseq
    %v50 = vshrl.u32 %v49, 7
    %v51 = vsub.s32 %v44, %v50
    %v52 = vrot.slane %v40, %v51
    %vm53 = vcmask 1041409
    %v54 = vsel %vm53, %v52, %v48
    %v56 = vadd.f32 %v21, %v54
    %vm57 = vcmask 25600
    %58 = vst.msk [vmem:[#allocation2] sm:$0x3] %vm57, %v56
    // Predicated region
    $region18: #{_extract_feat_jit.1} parent=1 // pred_check
      %p59 = pneg %p15
    $region19: #{_extract_feat_jit.1} parent=1 // pred_check_branch
      %61 = sbr.rel (%p59) target = $region21
    $region20: #{_extract_feat_jit.1} parent=1 // pred_region
      %v62 = vld [vmem:[#allocation2] sm:$0x3]
      %v63 = vld [vmem:[%s1] sm:$0xf]
      %v64 = vld [vmem:[%s2] sm:$0x1]
      %v66 = vlaneseq
      %v67 = vshrl.u32 %v66, 7
      %v68 = vsub.s32 0, %v67
      %v69 = vrot.slane %v64, %v68
      %vm71 = vcmask 31744
      %v73 = vsel %vm71, %v62, 0
      %v76 = vsel %vm30, %v63, 0
      %78 = vmatprep.subr.mxu0 0.0
      %79 = vmatpush1.msra.mxu0 %v76
      %80 = vmatprep.subr.mxu0 0.0
      %81 = vmatpush1.msra.mxu0 0.0
      %82 = vmatprep.subr.mxu0 0.0
      %83 = vmatpush1.msra.mxu0 0.0
      %84 = vmatprep.subr.mxu0 0.0
      %85 = vmatpush1.msra.mxu0 0.0
      %86 = vmatprep.subr.mxu0 0.0
      %87 = vmatpush1.msra.mxu0 0.0
      %88 = vmatprep.subr.mxu0 0.0
      %89 = vmatpush1.msra.mxu0 0.0
      %90 = vmatprep.subr.mxu0 0.0
      %91 = vmatpush1.msra.mxu0 0.0
      %92 = vmatprep.subr.mxu0 0.0
      %93 = vmatpush1.msra.mxu0 0.0
      %94 = vmatprep.subr.mxu0 0.0
      %95 = vmatpush1.msra.mxu0 0.0
      %96 = vmatprep.subr.mxu0 0.0
      %97 = vmatpush1.msra.mxu0 0.0
      %98 = vmatprep.subr.mxu0 0.0
      %99 = vmatpush1.msra.mxu0 0.0
      %100 = vmatprep.subr.mxu0 0.0
      %101 = vmatpush1.msra.mxu0 0.0
      %102 = vmatprep.subr.mxu0 0.0
      %103 = vmatpush1.msra.mxu0 0.0
      %104 = vmatprep.subr.mxu0 0.0
      %105 = vmatpush1.msra.mxu0 0.0
      %106 = vmatprep.subr.mxu0 0.0
      %107 = vmatpush1.msra.mxu0 0.0
      %108 = vmatprep.subr.mxu0 0.0
      %109 = vmatpush1.msra.mxu0 0.0
      %110 = vmatprep.subr.mxu0 0.0
      %111 = vmatpush1.msra.mxu0 0.0
      %112 = vmatprep.subr.mxu0 0.0
      %113 = vmatpush1.msra.mxu0 0.0
      %114 = vmatprep.subr.mxu0 0.0
      %115 = vmatpush1.msra.mxu0 0.0
      %116 = vmatprep.subr.mxu0 0.0
      %117 = vmatpush1.msra.mxu0 0.0
      %118 = vmatprep.subr.mxu0 0.0
      %119 = vmatpush1.msra.mxu0 0.0
      %120 = vmatprep.subr.mxu0 0.0
      %121 = vmatpush1.msra.mxu0 0.0
      %122 = vmatprep.subr.mxu0 0.0
      %123 = vmatpush1.msra.mxu0 0.0
      %124 = vmatprep.subr.mxu0 0.0
      %125 = vmatpush1.msra.mxu0 0.0
      %126 = vmatprep.subr.mxu0 0.0
      %127 = vmatpush1.msra.mxu0 0.0
      %128 = vmatprep.subr.mxu0 0.0
      %129 = vmatpush1.msra.mxu0 0.0
      %130 = vmatprep.subr.mxu0 0.0
      %131 = vmatpush1.msra.mxu0 0.0
      %132 = vmatprep.subr.mxu0 0.0
      %133 = vmatpush1.msra.mxu0 0.0
      %134 = vmatprep.subr.mxu0 0.0
      %135 = vmatpush1.msra.mxu0 0.0
      %136 = vmatprep.subr.mxu0 0.0
      %137 = vmatpush1.msra.mxu0 0.0
      %138 = vmatprep.subr.mxu0 0.0
      %139 = vmatpush1.msra.mxu0 0.0
      %140 = vmatprep.subr.mxu0 0.0
      %141 = vmatpush1.msra.mxu0 0.0
      %142 = vmatprep.mubr.f32.mxu0 0.0
      %143 = vmatmul.mubr.f32.gmra.mrb[0].mxu0 %v73
      %v144 = vpop.f32.mrb[0].mxu0
      %v145 = vadd.f32 %v69, %v144
      %v146 = vpop.f32.mrb[0].mxu0
      %147 = vdwg.mxu0
      %148 = vst [vmem:[#allocation3] sm:$0x3] %v145
    $region21: #{_extract_feat_jit.1} parent=1 // pred_fallthru
      _
    // Predicated region
    $region22: #{_extract_feat_jit.1} parent=1 // pred_check
      _
    $region23: #{_extract_feat_jit.1} parent=1 // pred_check_branch
      %150 = sbr.rel (0) target = $region25
    $region24: #{_extract_feat_jit.1} parent=1 // pred_region
      %s152 = ssub.s32 32, 32
      %153 = vsyncadd [#allocation4], %s152
      %s155 = sshll.u32 [#allocation3], 4
      %s156 = int_to_ptr.vmem [resolvable:$true] %s155
      %158 = dma.vmem_to_hbm [thread:$0]  %s156, 32, %s3, [#allocation4]
    $region25: #{_extract_feat_jit.1} parent=1 // pred_fallthru
      _
    // Predicated region
    $region26: #{_extract_feat_jit.1} parent=1 // pred_check
      _
    $region27: #{_extract_feat_jit.1} parent=1 // pred_check_branch
      %160 = sbr.rel (0) target = $region29
    $region28: #{_extract_feat_jit.1} parent=1 // pred_region
      %161 = dma.done [#allocation4], 32
    $region29: #{_extract_feat_jit.1} parent=1 // pred_fallthru
      _
    %162 = vsyncpa [#allocation4], 1

</llo_original>
